<compile_context>
chip_gen: v5e
topology: v5e:2x2
jax: 0.10.0
libtpu: 0.0.40
codegen_flags: <defaults>
</compile_context>

<pallas_src>
import functools

import jax
import jax.numpy as jnp
from jax.experimental import pallas as pl
from jax.experimental.pallas import tpu as pltpu


def _round_up(x, m):
    return (x + m - 1) // m * m


def _critic_kernel(act_ref, state_ref, w1_ref, b1_ref, w2_ref, b2_ref,
                   w3_ref, b3_ref, out_ref):
    """Whole forward pass for one batch block, entirely in VMEM/SMEM.

    act_ref:   (Bb, 1) int32 action indices (one-hot built in-kernel)
    state_ref: (Bb, S) state, same dtype as w1 (f32 or bf16)
    w1_ref:    (S, A*H)  bilinear weight, lane-dense: w1[s, j*H + h] = W[h, s, j]
    b1_ref:    (1, H)    w2_ref: (H, H)   b2_ref: (1, H)
    w3_ref:    (1, H)    lane-dense final weight row
    b3_ref:    (1,) f32 scalar in SMEM
    out_ref:   (1, Bb) f32 lane-dense output row for this block
    """
    state = state_ref[...]                               # (Bb, S)
    act = act_ref[...]                                   # (Bb, 1) int32
    H = b1_ref.shape[1]
    A = w1_ref.shape[1] // H

    # One MXU matmul covering every action branch: (Bb, S) @ (S, A*H) -> (Bb, A*H).
    all_h = jnp.dot(state, w1_ref[...], preferred_element_type=jnp.float32)

    # In-kernel one-hot select: h1[b, :] = all_h[b, action[b]*H : (action[b]+1)*H].
    # A static 128-aligned lane slices + VPU select-multiply-adds (no gather).
    # Out-of-range actions select nothing -> h1 = ReLU(b1) for that row.
    h1 = jnp.where(act == 0, 1.0, 0.0) * all_h[:, 0:H]
    for j in range(1, A):
        h1 = h1 + jnp.where(act == j, 1.0, 0.0) * all_h[:, j * H:(j + 1) * H]

    h1 = jnp.maximum(h1 + b1_ref[...], 0.0)              # Bilinear bias + ReLU

    # Linear(H, H) + ReLU   (Dropout = identity in eval mode)
    h2 = jnp.dot(h1.astype(w2_ref.dtype), w2_ref[...],
                 preferred_element_type=jnp.float32) + b2_ref[...]
    h2 = jnp.maximum(h2, 0.0)

    # Linear(H, 1) head, produced lane-dense:
    #   (1, H) @ (H, Bb) -> (1, Bb); one XLU transpose of h2 + a tiny M=1 matmul.
    h2t = jnp.transpose(h2)                               # (H, Bb)
    out_row = jnp.dot(w3_ref[...].astype(jnp.float32), h2t,
                      preferred_element_type=jnp.float32) + b3_ref[0]
    out_ref[...] = out_row.astype(out_ref.dtype)          # full-lane store


@functools.partial(jax.jit, static_argnames=("block_b", "core_parallel"))
def critic_forward(state, action, params, *, block_b=2048, core_parallel=False):
    """state: (B, S); action: (B,) int indices; returns (B, 1) f32.

    core_parallel=True shards the batch grid across TensorCores (v7x megacore).
    """
    w1, b1, w2, b2, w3, b3 = params
    B, S = state.shape
    AH = w1.shape[1]
    H = b1.shape[1]

    # Dominant HBM stream in the matmul dtype (halves state DMA on the bf16 path).
    state = state.astype(w1.dtype)

    # Batch blocking. grid = cdiv(B, bb): the last block may be ragged, so state is
    # never padded/copied in HBM. Only the tiny action vector is padded.
    bb = min(block_b, _round_up(B, 8))
    num_blocks = pl.cdiv(B, bb)
    Bp = num_blocks * bb

    act = action.astype(jnp.int32)
    if Bp != B:
        act = jnp.pad(act, ((0, Bp - B),))
    act2d = act.reshape(Bp, 1)

    # VMEM budget for the chosen block (double-buffered inputs + intermediates).
    w_bytes = int(w1.size * w1.dtype.itemsize + w2.size * w2.dtype.itemsize
                  + 4 * (b1.size + b2.size + w3.size))
    state_blk = bb * S * state.dtype.itemsize
    act_blk = bb * 128 * 4            # (bb,1) i32 lane-pads to a full 128-lane tile
    out_blk = 8 * bb * 4              # (1,bb) f32 sublane-pads to 8 sublanes
    interm = bb * AH * 4 + 3 * bb * H * 4   # all_h + h1/h2/temporaries
    vmem_est = 2 * (state_blk + act_blk + out_blk + w_bytes) + interm
    vmem_limit = int(min(max(vmem_est * 3 // 2, 16 * 1024 * 1024),
                         64 * 1024 * 1024))

    flops = 2 * Bp * (S * AH + H * H + H)
    bytes_accessed = int(Bp * 4 + state.size * state.dtype.itemsize
                         + w_bytes + Bp * 4)

    out = pl.pallas_call(
        _critic_kernel,
        # Lane-dense output: one (1, bb) row per block; leading dim is the block
        # index (squeezed out of the kernel view), so block dims == full dims.
        out_shape=jax.ShapeDtypeStruct((num_blocks, 1, bb), jnp.float32),
        grid=(num_blocks,),
        in_specs=[
            pl.BlockSpec((bb, 1), lambda i: (i, 0)),             # action indices
            pl.BlockSpec((bb, S), lambda i: (i, 0)),             # state
            pl.BlockSpec((S, AH), lambda i: (0, 0)),             # w1 (resident)
            pl.BlockSpec((1, H), lambda i: (0, 0)),              # b1
            pl.BlockSpec((H, H), lambda i: (0, 0)),              # w2 (resident)
            pl.BlockSpec((1, H), lambda i: (0, 0)),              # b2
            pl.BlockSpec((1, H), lambda i: (0, 0)),              # w3 (lane-dense row)
            pl.BlockSpec(memory_space=pltpu.MemorySpace.SMEM),   # b3 scalar
        ],
        out_specs=pl.BlockSpec((None, 1, bb), lambda i: (i, 0, 0)),
        compiler_params=pltpu.CompilerParams(
            dimension_semantics=(
                pltpu.CORE_PARALLEL if core_parallel else "parallel",),
            vmem_limit_bytes=vmem_limit),
        cost_estimate=pl.CostEstimate(
            flops=flops, transcendentals=0, bytes_accessed=bytes_accessed),
    )(act2d, state, w1, b1, w2, b2, w3, b3)

    return out.reshape(Bp)[:B].reshape(B, 1)


def init_params(key, state_size, num_actions, hidden_dims):
    """Deterministic parameter init (uniform, PyTorch-ish bounds)."""
    k1, k2, k3, k4, k5, k6 = jax.random.split(key, 6)
    bnd1 = 1.0 / jnp.sqrt(state_size)
    bnd2 = 1.0 / jnp.sqrt(hidden_dims)
    # Bilinear weight stored lane-dense as (S, A*H): w1[s, j*H + h] = W_torch[h, s, j]
    w1 = jax.random.uniform(k1, (state_size, num_actions * hidden_dims),
                            jnp.float32, -bnd1, bnd1)
    b1 = jax.random.uniform(k2, (1, hidden_dims), jnp.float32, -bnd1, bnd1)
    w2 = jax.random.uniform(k3, (hidden_dims, hidden_dims), jnp.float32, -bnd2, bnd2)
    b2 = jax.random.uniform(k4, (1, hidden_dims), jnp.float32, -bnd2, bnd2)
    w3 = jax.random.uniform(k5, (1, hidden_dims), jnp.float32, -bnd2, bnd2)
    b3 = jax.random.uniform(k6, (1,), jnp.float32, -bnd2, bnd2)
    return (w1, b1, w2, b2, w3, b3)


def critic_reference(state, action, params):
    """Pure-JAX reference of the same forward (eval mode, f32 math)."""
    w1, b1, w2, b2, w3, b3 = params
    S = state.shape[1]
    H = b1.shape[1]
    A = w1.shape[1] // H
    w1_r = w1.astype(jnp.float32).reshape(S, A, H)        # [s, j, h]
    act_oh = jax.nn.one_hot(action, A, dtype=jnp.float32)
    h = jnp.einsum("bs,bj,sjh->bh", state, act_oh, w1_r) + b1
    h = jnp.maximum(h, 0.0)
    h = jnp.maximum(h @ w2.astype(jnp.float32) + b2, 0.0)
    return jnp.sum(h * w3, axis=-1, keepdims=True) + b3[0]


if __name__ == "__main__":
    # Small shapes consistent with the module: state = flattened 8x8 board.
    state_size = 64          # width * height
    num_actions = 4
    hidden_dims = 128        # module default is 120; 128 keeps lane groups aligned

    key = jax.random.PRNGKey(0)
    kp, ks, ka = jax.random.split(key, 3)
    params = init_params(kp, state_size, num_actions, hidden_dims)

    # --- small batch (single block), f32 weights: strict check -------------------
    batch = 8
    state = jax.random.normal(ks, (batch, state_size), dtype=jnp.float32)
    action = jax.random.randint(ka, (batch,), 0, num_actions, dtype=jnp.int32)

    out = jax.block_until_ready(critic_forward(state, action, params))
    ref = critic_reference(state, action, params)
    assert out.shape == (batch, 1)
    assert jnp.allclose(out, ref, atol=1e-3, rtol=1e-3), (out, ref)

    # --- bf16 weights + bf16 state stream (f32 accumulation): looser tolerance ----
    w1, b1, w2, b2, w3, b3 = params
    params_bf16 = (w1.astype(jnp.bfloat16), b1, w2.astype(jnp.bfloat16), b2, w3, b3)
    out_bf16 = jax.block_until_ready(critic_forward(state, action, params_bf16))
    ref_bf16 = critic_reference(state, action, params_bf16)
    assert jnp.allclose(out_bf16, ref_bf16, atol=3e-2, rtol=3e-2), (out_bf16, ref_bf16)

    # --- multi-block grid with a ragged last block (no padded state copy) ---------
    batch2 = 300
    ks2, ka2 = jax.random.split(jax.random.PRNGKey(1))
    state2 = jax.random.normal(ks2, (batch2, state_size), dtype=jnp.float32)
    action2 = jax.random.randint(ka2, (batch2,), 0, num_actions, dtype=jnp.int32)
    out2 = jax.block_until_ready(
        critic_forward(state2, action2, params, block_b=128))
    ref2 = critic_reference(state2, action2, params)
    assert out2.shape == (batch2, 1)
    assert jnp.allclose(out2, ref2, atol=1e-3, rtol=1e-3), (out2, ref2)

    print("KERNEL_OK")
</pallas_src>

<mosaic_0001>
module attributes {stable_mosaic.version = 11 : i64} {
  func.func @_critic_kernel(%arg0: i32, %arg1: memref<8x1xi32, #tpu.memory_space<vmem>>, %arg2: memref<8x64xf32, #tpu.memory_space<vmem>>, %arg3: memref<64x512xf32, #tpu.memory_space<vmem>>, %arg4: memref<1x128xf32, #tpu.memory_space<vmem>>, %arg5: memref<128x128xf32, #tpu.memory_space<vmem>>, %arg6: memref<1x128xf32, #tpu.memory_space<vmem>>, %arg7: memref<1x128xf32, #tpu.memory_space<vmem>>, %arg8: memref<1xf32, #tpu.memory_space<smem>>, %arg9: memref<1x1x8xf32, #tpu.memory_space<vmem>>) attributes {dimension_semantics = [#tpu.dimension_semantics<parallel>], iteration_bounds = array<i64: 1>, scalar_prefetch = 0 : i64, scratch_operands = 0 : i64, tpu.core_type = #tpu.core_type<tc>, window_params = [{transform_indices = @transform_0, window_bounds = array<i64: 8, 1>}, {transform_indices = @transform_1, window_bounds = array<i64: 8, 64>}, {pipeline_mode = #tpu.pipeline_mode<synchronous>, transform_indices = @transform_2, window_bounds = array<i64: 64, 512>}, {pipeline_mode = #tpu.pipeline_mode<synchronous>, transform_indices = @transform_3, window_bounds = array<i64: 1, 128>}, {pipeline_mode = #tpu.pipeline_mode<synchronous>, transform_indices = @transform_4, window_bounds = array<i64: 128, 128>}, {pipeline_mode = #tpu.pipeline_mode<synchronous>, transform_indices = @transform_5, window_bounds = array<i64: 1, 128>}, {pipeline_mode = #tpu.pipeline_mode<synchronous>, transform_indices = @transform_6, window_bounds = array<i64: 1, 128>}, {transform_indices = @transform_7, window_bounds = array<i64: 1>}, {transform_indices = @transform_8, window_bounds = array<i64: 1, 1, 8>}]} {
    %c0 = arith.constant 0 : index
    %c0_0 = arith.constant 0 : index
    %0 = vector.load %arg2[%c0, %c0_0] : memref<8x64xf32, #tpu.memory_space<vmem>>, vector<8x64xf32>
    %c0_1 = arith.constant 0 : index
    %c0_2 = arith.constant 0 : index
    %1 = vector.load %arg1[%c0_1, %c0_2] : memref<8x1xi32, #tpu.memory_space<vmem>>, vector<8x1xi32>
    %c0_3 = arith.constant 0 : index
    %c0_4 = arith.constant 0 : index
    %2 = vector.load %arg3[%c0_3, %c0_4] : memref<64x512xf32, #tpu.memory_space<vmem>>, vector<64x512xf32>
    %cst = arith.constant dense<0.000000e+00> : vector<8x512xf32>
    %3 = tpu.matmul %0, %2, %cst {dimension_numbers = #tpu.dot_dimension_numbers<[1], [0], [0], [1], [0, 0, 1, 1], [], []>} : vector<8x64xf32>, vector<64x512xf32>, vector<8x512xf32> -> vector<8x512xf32>
    %c0_i32 = arith.constant 0 : i32
    %4 = vector.broadcast %c0_i32 : i32 to vector<8x1xi32>
    %5 = arith.cmpi eq, %1, %4 : vector<8x1xi32>
    %cst_5 = arith.constant 1.000000e+00 : f32
    %cst_6 = arith.constant 0.000000e+00 : f32
    %6 = vector.broadcast %cst_5 : f32 to vector<8x1xf32>
    %7 = vector.broadcast %cst_6 : f32 to vector<8x1xf32>
    %8 = arith.select %5, %6, %7 : vector<8x1xi1>, vector<8x1xf32>
    %9 = vector.extract_strided_slice %3 {offsets = [0, 0], sizes = [8, 128], strides = [1, 1]} : vector<8x512xf32> to vector<8x128xf32>
    %10 = vector.broadcast %8 : vector<8x1xf32> to vector<8x128xf32>
    %11 = arith.mulf %10, %9 : vector<8x128xf32>
    %c1_i32 = arith.constant 1 : i32
    %12 = vector.broadcast %c1_i32 : i32 to vector<8x1xi32>
    %13 = arith.cmpi eq, %1, %12 : vector<8x1xi32>
    %cst_7 = arith.constant 1.000000e+00 : f32
    %cst_8 = arith.constant 0.000000e+00 : f32
    %14 = vector.broadcast %cst_7 : f32 to vector<8x1xf32>
    %15 = vector.broadcast %cst_8 : f32 to vector<8x1xf32>
    %16 = arith.select %13, %14, %15 : vector<8x1xi1>, vector<8x1xf32>
    %17 = vector.extract_strided_slice %3 {offsets = [0, 128], sizes = [8, 128], strides = [1, 1]} : vector<8x512xf32> to vector<8x128xf32>
    %18 = vector.broadcast %16 : vector<8x1xf32> to vector<8x128xf32>
    %19 = arith.mulf %18, %17 : vector<8x128xf32>
    %20 = arith.addf %11, %19 : vector<8x128xf32>
    %c2_i32 = arith.constant 2 : i32
    %21 = vector.broadcast %c2_i32 : i32 to vector<8x1xi32>
    %22 = arith.cmpi eq, %1, %21 : vector<8x1xi32>
    %cst_9 = arith.constant 1.000000e+00 : f32
    %cst_10 = arith.constant 0.000000e+00 : f32
    %23 = vector.broadcast %cst_9 : f32 to vector<8x1xf32>
    %24 = vector.broadcast %cst_10 : f32 to vector<8x1xf32>
    %25 = arith.select %22, %23, %24 : vector<8x1xi1>, vector<8x1xf32>
    %26 = vector.extract_strided_slice %3 {offsets = [0, 256], sizes = [8, 128], strides = [1, 1]} : vector<8x512xf32> to vector<8x128xf32>
    %27 = vector.broadcast %25 : vector<8x1xf32> to vector<8x128xf32>
    %28 = arith.mulf %27, %26 : vector<8x128xf32>
    %29 = arith.addf %20, %28 : vector<8x128xf32>
    %c3_i32 = arith.constant 3 : i32
    %30 = vector.broadcast %c3_i32 : i32 to vector<8x1xi32>
    %31 = arith.cmpi eq, %1, %30 : vector<8x1xi32>
    %cst_11 = arith.constant 1.000000e+00 : f32
    %cst_12 = arith.constant 0.000000e+00 : f32
    %32 = vector.broadcast %cst_11 : f32 to vector<8x1xf32>
    %33 = vector.broadcast %cst_12 : f32 to vector<8x1xf32>
    %34 = arith.select %31, %32, %33 : vector<8x1xi1>, vector<8x1xf32>
    %35 = vector.extract_strided_slice %3 {offsets = [0, 384], sizes = [8, 128], strides = [1, 1]} : vector<8x512xf32> to vector<8x128xf32>
    %36 = vector.broadcast %34 : vector<8x1xf32> to vector<8x128xf32>
    %37 = arith.mulf %36, %35 : vector<8x128xf32>
    %38 = arith.addf %29, %37 : vector<8x128xf32>
    %c0_13 = arith.constant 0 : index
    %c0_14 = arith.constant 0 : index
    %39 = vector.load %arg4[%c0_13, %c0_14] : memref<1x128xf32, #tpu.memory_space<vmem>>, vector<1x128xf32>
    %40 = vector.broadcast %39 : vector<1x128xf32> to vector<8x128xf32>
    %41 = arith.addf %38, %40 : vector<8x128xf32>
    %cst_15 = arith.constant 0.000000e+00 : f32
    %42 = vector.broadcast %cst_15 : f32 to vector<8x128xf32>
    %43 = arith.maximumf %41, %42 : vector<8x128xf32>
    %c0_16 = arith.constant 0 : index
    %c0_17 = arith.constant 0 : index
    %44 = vector.load %arg5[%c0_16, %c0_17] : memref<128x128xf32, #tpu.memory_space<vmem>>, vector<128x128xf32>
    %cst_18 = arith.constant dense<0.000000e+00> : vector<8x128xf32>
    %45 = tpu.matmul %43, %44, %cst_18 {dimension_numbers = #tpu.dot_dimension_numbers<[1], [0], [0], [1], [0, 0, 1, 1], [], []>} : vector<8x128xf32>, vector<128x128xf32>, vector<8x128xf32> -> vector<8x128xf32>
    %c0_19 = arith.constant 0 : index
    %c0_20 = arith.constant 0 : index
    %46 = vector.load %arg6[%c0_19, %c0_20] : memref<1x128xf32, #tpu.memory_space<vmem>>, vector<1x128xf32>
    %47 = vector.broadcast %46 : vector<1x128xf32> to vector<8x128xf32>
    %48 = arith.addf %45, %47 : vector<8x128xf32>
    %cst_21 = arith.constant 0.000000e+00 : f32
    %49 = vector.broadcast %cst_21 : f32 to vector<8x128xf32>
    %50 = arith.maximumf %48, %49 : vector<8x128xf32>
    %51 = tpu.transpose %50, [1, 0] : vector<8x128xf32> -> vector<128x8xf32>
    %c0_22 = arith.constant 0 : index
    %c0_23 = arith.constant 0 : index
    %52 = vector.load %arg7[%c0_22, %c0_23] : memref<1x128xf32, #tpu.memory_space<vmem>>, vector<1x128xf32>
    %cst_24 = arith.constant dense<0.000000e+00> : vector<1x8xf32>
    %53 = tpu.matmul %52, %51, %cst_24 {dimension_numbers = #tpu.dot_dimension_numbers<[1], [0], [0], [1], [0, 0, 1, 1], [], []>} : vector<1x128xf32>, vector<128x8xf32>, vector<1x8xf32> -> vector<1x8xf32>
    %c0_25 = arith.constant 0 : index
    %54 = memref.load %arg8[%c0_25] : memref<1xf32, #tpu.memory_space<smem>>
    %55 = vector.broadcast %54 : f32 to vector<1x8xf32>
    %56 = arith.addf %53, %55 : vector<1x8xf32>
    %c0_26 = arith.constant 0 : index
    %c0_27 = arith.constant 0 : index
    %c0_28 = arith.constant 0 : index
    %57 = vector.load %arg9[%c0_26, %c0_27, %c0_28] : memref<1x1x8xf32, #tpu.memory_space<vmem>>, vector<1x1x8xf32>
    %58 = vector.shape_cast %57 : vector<1x1x8xf32> to vector<1x8xf32>
    %59 = vector.shape_cast %56 : vector<1x8xf32> to vector<1x1x8xf32>
    tpu.vector_store %arg9[%c0_26, %c0_27, %c0_28], %59 {strides = array<i32>} : memref<1x1x8xf32, #tpu.memory_space<vmem>>, vector<1x1x8xf32>,
    return
  }
  func.func @transform_0(%arg0: i32) -> (i32, i32) {
    %c0_i32 = arith.constant 0 : i32
    %c0_i32_0 = arith.constant 0 : i32
    return %arg0, %c0_i32 : i32, i32
  }
  func.func @transform_1(%arg0: i32) -> (i32, i32) {
    %c0_i32 = arith.constant 0 : i32
    %c0_i32_0 = arith.constant 0 : i32
    return %arg0, %c0_i32 : i32, i32
  }
  func.func @transform_2(%arg0: i32) -> (i32, i32) {
    %c0_i32 = arith.constant 0 : i32
    %c0_i32_0 = arith.constant 0 : i32
    %c0_i32_1 = arith.constant 0 : i32
    return %c0_i32, %c0_i32_0 : i32, i32
  }
  func.func @transform_3(%arg0: i32) -> (i32, i32) {
    %c0_i32 = arith.constant 0 : i32
    %c0_i32_0 = arith.constant 0 : i32
    %c0_i32_1 = arith.constant 0 : i32
    return %c0_i32, %c0_i32_0 : i32, i32
  }
  func.func @transform_4(%arg0: i32) -> (i32, i32) {
    %c0_i32 = arith.constant 0 : i32
    %c0_i32_0 = arith.constant 0 : i32
    %c0_i32_1 = arith.constant 0 : i32
    return %c0_i32, %c0_i32_0 : i32, i32
  }
  func.func @transform_5(%arg0: i32) -> (i32, i32) {
    %c0_i32 = arith.constant 0 : i32
    %c0_i32_0 = arith.constant 0 : i32
    %c0_i32_1 = arith.constant 0 : i32
    return %c0_i32, %c0_i32_0 : i32, i32
  }
  func.func @transform_6(%arg0: i32) -> (i32, i32) {
    %c0_i32 = arith.constant 0 : i32
    %c0_i32_0 = arith.constant 0 : i32
    %c0_i32_1 = arith.constant 0 : i32
    return %c0_i32, %c0_i32_0 : i32, i32
  }
  func.func @transform_7(%arg0: i32) -> i32 {
    %c0_i32 = arith.constant 0 : i32
    %c0_i32_0 = arith.constant 0 : i32
    return %c0_i32 : i32
  }
  func.func @transform_8(%arg0: i32) -> (i32, i32, i32) {
    %c0_i32 = arith.constant 0 : i32
    %c0_i32_0 = arith.constant 0 : i32
    %c0_i32_1 = arith.constant 0 : i32
    return %arg0, %c0_i32, %c0_i32_0 : i32, i32, i32
  }
}

</mosaic_0001>

<llo_original>
// kernel: critic_forward.1
$region0: #{critic_forward.1}
  #allocation0 [shape = 'u32[]', space=smem, size = 0x4, offset = 0x4, fixed_abs, tag = 'smem constant byte address 0x4 - core index']
  #allocation1 [shape = 'u32[72,128]{1,0:T(1,128)}', space=vmem, size = 0x9000, scoped, tag = 'internal scratch']
  #allocation2 [shape = 'f32[1]{0:T(128)S(6)}', space=smem, size = 0x200, scoped, tag = 'scoped memory for critic_forward.1']
  %s0 = inlined_call_operand.vmem [shape: s32[8,1], index: 0, kind: input, shape index: {}]
  %s1 = inlined_call_operand.vmem [shape: f32[8,64], index: 1, kind: input, shape index: {}]
  %s2 = inlined_call_operand.hbm [shape: f32[64,512], index: 2, kind: input, shape index: {}]
  %s3 = inlined_call_operand.vmem [shape: f32[1,128], index: 3, kind: input, shape index: {}]
  %s4 = inlined_call_operand.hbm [shape: f32[128,128], index: 4, kind: input, shape index: {}]
  %s5 = inlined_call_operand.vmem [shape: f32[1,128], index: 5, kind: input, shape index: {}]
  %s6 = inlined_call_operand.vmem [shape: f32[1,128], index: 6, kind: input, shape index: {}]
  %s7 = inlined_call_operand.<no memory space> [shape: f32[1], index: 7, kind: input, shape index: {}]
  %s8 = inlined_call_operand.hbm [shape: f32[1,1,8], index: 8, kind: output, shape index: {}]
  %s9 = sld [smem:[#allocation0]]
  $region50: #{critic_forward.1} parent=0
    _
  %s11 = ssub.s32 1, %s9
  %s12 = scalar_select 0, %s11, %s9
  %13 = sst [smem:[#allocation2]] %s7
  $region1: #{critic_forward.1} parent=0
    #allocation3 [shape = 'u8[131072]{0}', space=vmem, size = 0x20000, scoped, tag = 'input window, operand 2, single buffered']
    #allocation4 [shape = 's32[1]{0}', space=sflag, size = 0x4, scoped, tag = 'scoped memory for critic_forward.1']
    #allocation5 [shape = 's32[1]{0}', space=sflag, size = 0x4, scoped, tag = 'scoped memory for critic_forward.1']
    #allocation6 [shape = 'u8[65536]{0}', space=vmem, size = 0x10000, scoped, tag = 'input window, operand 4, single buffered']
    #allocation7 [shape = 's32[1]{0}', space=sflag, size = 0x4, scoped, tag = 'scoped memory for critic_forward.1']
    #allocation8 [shape = 'u8[512]{0}', space=vmem, size = 0x400, scoped, tag = 'output window, operand 0, single buffered']
    %14 = vsyncpa [#allocation4], 0
    %15 = vsyncpa [#allocation7], 0
    %16 = vsyncpa [#allocation5], 0
    // Predicated region
    $region2: #{critic_forward.1} parent=1 // pred_check
      _
    $region3: #{critic_forward.1} parent=1 // pred_check_branch
      %18 = sbr.rel (0) target = $region5
    $region4: #{critic_forward.1} parent=1 // pred_region
      _
    $region5: #{critic_forward.1} parent=1 // pred_fallthru
      _
    // Predicated region
    $region6: #{critic_forward.1} parent=1 // pred_check
      _
    $region7: #{critic_forward.1} parent=1 // pred_check_branch
      %20 = sbr.rel (0) target = $region9
    $region8: #{critic_forward.1} parent=1 // pred_region
      _
    $region9: #{critic_forward.1} parent=1 // pred_fallthru
      _
    // Predicated region
    $region10: #{critic_forward.1} parent=1 // pred_check
      _
    $region11: #{critic_forward.1} parent=1 // pred_check_branch
      %22 = sbr.rel (0) target = $region13
    $region12: #{critic_forward.1} parent=1 // pred_region
      %24 = vsyncadd [#allocation4], 0
      %s25 = sshll.u32 %s2, 4
      %s26 = int_to_ptr.hbm [resolvable:$true] %s25
      %s27 = sshll.u32 [#allocation3], 4
      %s28 = int_to_ptr.vmem [resolvable:$true] %s27
      %33 = dma.hbm_to_vmem [thread:$0]  %s26, 4096, %s28, [#allocation4], 512, 512, 32
    $region13: #{critic_forward.1} parent=1 // pred_fallthru
      _
    // Predicated region
    $region14: #{critic_forward.1} parent=1 // pred_check
      _
    $region15: #{critic_forward.1} parent=1 // pred_check_branch
      %35 = sbr.rel (0) target = $region17
    $region16: #{critic_forward.1} parent=1 // pred_region
      _
    $region17: #{critic_forward.1} parent=1 // pred_fallthru
      _
    // Predicated region
    $region18: #{critic_forward.1} parent=1 // pred_check
      _
    $region19: #{critic_forward.1} parent=1 // pred_check_branch
      %37 = sbr.rel (0) target = $region21
    $region20: #{critic_forward.1} parent=1 // pred_region
      %39 = vsyncadd [#allocation7], 0
      %s40 = sshll.u32 %s4, 4
      %s41 = int_to_ptr.hbm [resolvable:$true] %s40
      %s42 = sshll.u32 [#allocation6], 4
      %s43 = int_to_ptr.vmem [resolvable:$true] %s42
      %48 = dma.hbm_to_vmem [thread:$0]  %s41, 2048, %s43, [#allocation7], 128, 128, 8
    $region21: #{critic_forward.1} parent=1 // pred_fallthru
      _
    // Predicated region
    $region22: #{critic_forward.1} parent=1 // pred_check
      _
    $region23: #{critic_forward.1} parent=1 // pred_check_branch
      %50 = sbr.rel (0) target = $region25
    $region24: #{critic_forward.1} parent=1 // pred_region
      _
    $region25: #{critic_forward.1} parent=1 // pred_fallthru
      _
    // Predicated region
    $region26: #{critic_forward.1} parent=1 // pred_check
      _
    $region27: #{critic_forward.1} parent=1 // pred_check_branch
      %52 = sbr.rel (0) target = $region29
    $region28: #{critic_forward.1} parent=1 // pred_region
      _
    $region29: #{critic_forward.1} parent=1 // pred_fallthru
      _
    // Predicated region
    $region30: #{critic_forward.1} parent=1 // pred_check
      _
    $region31: #{critic_forward.1} parent=1 // pred_check_branch
      %54 = sbr.rel (0) target = $region33
    $region32: #{critic_forward.1} parent=1 // pred_region
      _
    $region33: #{critic_forward.1} parent=1 // pred_fallthru
      _
    // Predicated region
    $region34: #{critic_forward.1} parent=1 // pred_check
      _
    $region35: #{critic_forward.1} parent=1 // pred_check_branch
      %56 = sbr.rel (0) target = $region37
    $region36: #{critic_forward.1} parent=1 // pred_region
      %58 = dma.done [#allocation4], 4096
    $region37: #{critic_forward.1} parent=1 // pred_fallthru
      _
    // Predicated region
    $region38: #{critic_forward.1} parent=1 // pred_check
      _
    $region39: #{critic_forward.1} parent=1 // pred_check_branch
      %60 = sbr.rel (0) target = $region41
    $region40: #{critic_forward.1} parent=1 // pred_region
      %62 = dma.done [#allocation7], 2048
    $region41: #{critic_forward.1} parent=1 // pred_fallthru
      _
    %v63 = vld [vmem:[%s1] sm:$0xff]
    %v64 = vld [vmem:[%s0] sm:$0xff]
    %v65 = vld [vmem:[#allocation3] sm:$0xff]
    %v66 = vld [vmem:[#allocation3 + $0x8] sm:$0xff]
    %v67 = vld [vmem:[#allocation3 + $0x10] sm:$0xff]
    %v68 = vld [vmem:[#allocation3 + $0x18] sm:$0xff]
    %v69 = vld [vmem:[#allocation3 + $0x20] sm:$0xff]
    %v70 = vld [vmem:[#allocation3 + $0x28] sm:$0xff]
    %v71 = vld [vmem:[#allocation3 + $0x30] sm:$0xff]
    %v72 = vld [vmem:[#allocation3 + $0x38] sm:$0xff]
    %v73 = vld [vmem:[#allocation3 + $0x40] sm:$0xff]
    %v74 = vld [vmem:[#allocation3 + $0x48] sm:$0xff]
    %v75 = vld [vmem:[#allocation3 + $0x50] sm:$0xff]
    %v76 = vld [vmem:[#allocation3 + $0x58] sm:$0xff]
    %v77 = vld [vmem:[#allocation3 + $0x60] sm:$0xff]
    %v78 = vld [vmem:[#allocation3 + $0x68] sm:$0xff]
    %v79 = vld [vmem:[#allocation3 + $0x70] sm:$0xff]
    %v80 = vld [vmem:[#allocation3 + $0x78] sm:$0xff]
    %v81 = vld [vmem:[#allocation3 + $0x80] sm:$0xff]
    %v82 = vld [vmem:[#allocation3 + $0x88] sm:$0xff]
    %v83 = vld [vmem:[#allocation3 + $0x90] sm:$0xff]
    %v84 = vld [vmem:[#allocation3 + $0x98] sm:$0xff]
    %v85 = vld [vmem:[#allocation3 + $0xa0] sm:$0xff]
    %v86 = vld [vmem:[#allocation3 + $0xa8] sm:$0xff]
    %v87 = vld [vmem:[#allocation3 + $0xb0] sm:$0xff]
    %v88 = vld [vmem:[#allocation3 + $0xb8] sm:$0xff]
    %v89 = vld [vmem:[#allocation3 + $0xc0] sm:$0xff]
    %v90 = vld [vmem:[#allocation3 + $0xc8] sm:$0xff]
    %v91 = vld [vmem:[#allocation3 + $0xd0] sm:$0xff]
    %v92 = vld [vmem:[#allocation3 + $0xd8] sm:$0xff]
    %v93 = vld [vmem:[#allocation3 + $0xe0] sm:$0xff]
    %v94 = vld [vmem:[#allocation3 + $0xe8] sm:$0xff]
    %v95 = vld [vmem:[#allocation3 + $0xf0] sm:$0xff]
    %v96 = vld [vmem:[#allocation3 + $0xf8] sm:$0xff]
    %vm97 = vcmask 523264
    %v99 = vsel %vm97, %v63, 0
    %101 = vmatpush.msra.mxu0 0.0
    %102 = vmatpush.msra.mxu0 0.0
    %103 = vmatpush.msra.mxu0 0.0
    %104 = vmatpush.msra.mxu0 0.0
    %105 = vmatpush.msra.mxu0 0.0
    %106 = vmatpush.msra.mxu0 0.0
    %107 = vmatpush.msra.mxu0 0.0
    %108 = vmatpush.msra.mxu0 0.0
    %109 = vmatpush.msra.mxu0 %v93
    %110 = vmatpush.msra.mxu0 %v89
    %111 = vmatpush.msra.mxu0 %v85
    %112 = vmatpush.msra.mxu0 %v81
    %113 = vmatpush.msra.mxu0 %v77
    %114 = vmatpush.msra.mxu0 %v73
    %115 = vmatpush.msra.mxu0 %v69
    %116 = vmatpush.msra.mxu0 %v65
    %117 = vmatmul.f32.gmra.mxu0 %v99
    %v118 = vpop.f32.mrf.mxu0
    %v119 = vadd.f32 0.0, %v118
    %120 = vdwg.mxu0
    %121 = vmatpush.msra.mxu0 0.0
    %122 = vmatpush.msra.mxu0 0.0
    %123 = vmatpush.msra.mxu0 0.0
    %124 = vmatpush.msra.mxu0 0.0
    %125 = vmatpush.msra.mxu0 0.0
    %126 = vmatpush.msra.mxu0 0.0
    %127 = vmatpush.msra.mxu0 0.0
    %128 = vmatpush.msra.mxu0 0.0
    %129 = vmatpush.msra.mxu0 %v94
    %130 = vmatpush.msra.mxu0 %v90
    %131 = vmatpush.msra.mxu0 %v86
    %132 = vmatpush.msra.mxu0 %v82
    %133 = vmatpush.msra.mxu0 %v78
    %134 = vmatpush.msra.mxu0 %v74
    %135 = vmatpush.msra.mxu0 %v70
    %136 = vmatpush.msra.mxu0 %v66
    %137 = vmatmul.f32.gmra.mxu0 %v99
    %v138 = vpop.f32.mrf.mxu0
    %v139 = vadd.f32 0.0, %v138
    %140 = vdwg.mxu0
    %141 = vmatpush.msra.mxu0 0.0
    %142 = vmatpush.msra.mxu0 0.0
    %143 = vmatpush.msra.mxu0 0.0
    %144 = vmatpush.msra.mxu0 0.0
    %145 = vmatpush.msra.mxu0 0.0
    %146 = vmatpush.msra.mxu0 0.0
    %147 = vmatpush.msra.mxu0 0.0
    %148 = vmatpush.msra.mxu0 0.0
    %149 = vmatpush.msra.mxu0 %v95
    %150 = vmatpush.msra.mxu0 %v91
    %151 = vmatpush.msra.mxu0 %v87
    %152 = vmatpush.msra.mxu0 %v83
    %153 = vmatpush.msra.mxu0 %v79
    %154 = vmatpush.msra.mxu0 %v75
    %155 = vmatpush.msra.mxu0 %v71
    %156 = vmatpush.msra.mxu0 %v67
    %157 = vmatmul.f32.gmra.mxu0 %v99
    %v158 = vpop.f32.mrf.mxu0
    %v159 = vadd.f32 0.0, %v158
    %160 = vdwg.mxu0
    %161 = vmatpush.msra.mxu0 0.0
    %162 = vmatpush.msra.mxu0 0.0
    %163 = vmatpush.msra.mxu0 0.0
    %164 = vmatpush.msra.mxu0 0.0
    %165 = vmatpush.msra.mxu0 0.0
    %166 = vmatpush.msra.mxu0 0.0
    %167 = vmatpush.msra.mxu0 0.0
    %168 = vmatpush.msra.mxu0 0.0
    %169 = vmatpush.msra.mxu0 %v96
    %170 = vmatpush.msra.mxu0 %v92
    %171 = vmatpush.msra.mxu0 %v88
    %172 = vmatpush.msra.mxu0 %v84
    %173 = vmatpush.msra.mxu0 %v80
    %174 = vmatpush.msra.mxu0 %v76
    %175 = vmatpush.msra.mxu0 %v72
    %176 = vmatpush.msra.mxu0 %v68
    %177 = vmatmul.f32.gmra.mxu0 %v99
    %v178 = vpop.f32.mrf.mxu0
    %v179 = vadd.f32 0.0, %v178
    %180 = vdwg.mxu0
    %vm181 = vcmp.eq.s32.totalorder %v64, 0
    %v182 = vsel %vm181, 1.0, 0.0
    %184 = vset.pattern.permute.xlu0 0
    %185 = vperm.xlu0 %184, %v182
    %v186 = vpop.permute.xlu0 %185
    %v188 = vmul.f32 %v186, %v119
    %vm189 = vcmp.eq.s32.totalorder %v64, 1
    %v190 = vsel %vm189, 1.0, 0.0
    %192 = vset.pattern.permute.xlu0 0
    %193 = vperm.xlu0 %192, %v190
    %v194 = vpop.permute.xlu0 %193
    %v196 = vmul.f32 %v194, %v139
    %v197 = vadd.f32 %v188, %v196
    %vm198 = vcmp.eq.s32.totalorder %v64, 2
    %v199 = vsel %vm198, 1.0, 0.0
    %201 = vset.pattern.permute.xlu0 0
    %202 = vperm.xlu0 %201, %v199
    %v203 = vpop.permute.xlu0 %202
    %v205 = vmul.f32 %v203, %v159
    %v206 = vadd.f32 %v197, %v205
    %vm207 = vcmp.eq.s32.totalorder %v64, 3
    %v208 = vsel %vm207, 1.0, 0.0
    %210 = vset.pattern.permute.xlu0 0
    %211 = vperm.xlu0 %210, %v208
    %v212 = vpop.permute.xlu0 %211
    %v214 = vmul.f32 %v212, %v179
    %v215 = vadd.f32 %v206, %v214
    %v216 = vld [vmem:[%s3] sm:$0x1]
    %v218 = vperm.slane %v216, 0
    %v220 = vadd.f32 %v215, %v218
    %v221 = vmax.f32 %v220, 0.0
    %v222 = vld [vmem:[#allocation6] sm:$0xff]
    %v223 = vld [vmem:[#allocation6 + $0x8] sm:$0xff]
    %v224 = vld [vmem:[#allocation6 + $0x10] sm:$0xff]
    %v225 = vld [vmem:[#allocation6 + $0x18] sm:$0xff]
    %v226 = vld [vmem:[#allocation6 + $0x20] sm:$0xff]
    %v227 = vld [vmem:[#allocation6 + $0x28] sm:$0xff]
    %v228 = vld [vmem:[#allocation6 + $0x30] sm:$0xff]
    %v229 = vld [vmem:[#allocation6 + $0x38] sm:$0xff]
    %v230 = vld [vmem:[#allocation6 + $0x40] sm:$0xff]
    %v231 = vld [vmem:[#allocation6 + $0x48] sm:$0xff]
    %v232 = vld [vmem:[#allocation6 + $0x50] sm:$0xff]
    %v233 = vld [vmem:[#allocation6 + $0x58] sm:$0xff]
    %v234 = vld [vmem:[#allocation6 + $0x60] sm:$0xff]
    %v235 = vld [vmem:[#allocation6 + $0x68] sm:$0xff]
    %v236 = vld [vmem:[#allocation6 + $0x70] sm:$0xff]
    %v237 = vld [vmem:[#allocation6 + $0x78] sm:$0xff]
    %v238 = vld [vmem:[%s5] sm:$0x1]
    %v240 = vperm.slane %v238, 0
    %242 = vmatpush.msra.mxu0 %v237
    %243 = vmatpush.msra.mxu0 %v236
    %244 = vmatpush.msra.mxu0 %v235
    %245 = vmatpush.msra.mxu0 %v234
    %246 = vmatpush.msra.mxu0 %v233
    %247 = vmatpush.msra.mxu0 %v232
    %248 = vmatpush.msra.mxu0 %v231
    %249 = vmatpush.msra.mxu0 %v230
    %250 = vmatpush.msra.mxu0 %v229
    %251 = vmatpush.msra.mxu0 %v228
    %252 = vmatpush.msra.mxu0 %v227
    %253 = vmatpush.msra.mxu0 %v226
    %254 = vmatpush.msra.mxu0 %v225
    %255 = vmatpush.msra.mxu0 %v224
    %256 = vmatpush.msra.mxu0 %v223
    %257 = vmatpush.msra.mxu0 %v222
    %258 = vmatmul.f32.gmra.mxu0 %v221
    %v259 = vpop.f32.mrf.mxu0
    %v260 = vadd.f32 %v240, %v259
    %261 = vdwg.mxu0
    %v262 = vmax.f32 %v260, 0.0
    %v263 = vld [vmem:[%s6] sm:$0x1]
    %s264 = sld [smem:[#allocation2]]
    %v265 = vstv %s264
    %266 = vmatpush.xpose.msra.mxu0 0.0
    %267 = vmatpush.xpose.msra.mxu0 0.0
    %268 = vmatpush.xpose.msra.mxu0 0.0
    %269 = vmatpush.xpose.msra.mxu0 0.0
    %270 = vmatpush.xpose.msra.mxu0 0.0
    %271 = vmatpush.xpose.msra.mxu0 0.0
    %272 = vmatpush.xpose.msra.mxu0 0.0
    %273 = vmatpush.xpose.msra.mxu0 0.0
    %274 = vmatpush.xpose.msra.mxu0 0.0
    %275 = vmatpush.xpose.msra.mxu0 0.0
    %276 = vmatpush.xpose.msra.mxu0 0.0
    %277 = vmatpush.xpose.msra.mxu0 0.0
    %278 = vmatpush.xpose.msra.mxu0 0.0
    %279 = vmatpush.xpose.msra.mxu0 0.0
    %280 = vmatpush.xpose.msra.mxu0 0.0
    %281 = vmatpush.xpose.msra.mxu0 %v262
    %282 = vmatmul.f32.gmra.mxu0 %v263
    %v283 = vpop.f32.mrf.mxu0
    %v284 = vadd.f32 %v265, %v283
    %285 = vdwg.mxu0
    %vm286 = vcmask 57344
    %287 = vst.msk [vmem:[#allocation8] sm:$0x1] %vm286, %v284
    // Predicated region
    $region42: #{critic_forward.1} parent=1 // pred_check
      _
    $region43: #{critic_forward.1} parent=1 // pred_check_branch
      %289 = sbr.rel (0) target = $region45
    $region44: #{critic_forward.1} parent=1 // pred_region
      %291 = vsyncadd [#allocation5], 0
      %s293 = sshll.u32 [#allocation8], 4
      %s294 = int_to_ptr.vmem [resolvable:$true] %s293
      %s295 = sshll.u32 %s8, 4
      %s296 = int_to_ptr.hbm [resolvable:$true] %s295
      %298 = dma.vmem_to_hbm [thread:$0]  %s294, 16, %s296, [#allocation5]
    $region45: #{critic_forward.1} parent=1 // pred_fallthru
      _
    // Predicated region
    $region46: #{critic_forward.1} parent=1 // pred_check
      _
    $region47: #{critic_forward.1} parent=1 // pred_check_branch
      %300 = sbr.rel (0) target = $region49
    $region48: #{critic_forward.1} parent=1 // pred_region
      %302 = dma.done [#allocation5], 16
    $region49: #{critic_forward.1} parent=1 // pred_fallthru
      _
    %303 = vsyncpa [#allocation4], 1
    %304 = vsyncpa [#allocation7], 1
    %305 = vsyncpa [#allocation5], 1

</llo_original>
